<compile_context>
chip_gen: v5e
topology: v5e:2x2
jax: 0.10.0
libtpu: 0.0.40
codegen_flags: <defaults>
</compile_context>

<pallas_src>
import functools

import jax
import jax.numpy as jnp
from jax import lax
from jax.experimental import pallas as pl
from jax.experimental.pallas import tpu as pltpu

ALPHA = 0.25
GAMMA = 2.0

SUBLANES = 8
LANES = 128
# (2048, 128) f32 = 1 MiB per input buffer; 2 inputs x 2 buffers = 4 MiB.
# Sweepable to 4096 on all generations (review: 2048-4096).
MAX_BLOCK_ROWS = 2048


def _round_up(a, b):
    return (a + b - 1) // b * b


def _focal_loss_kernel(x_ref, t_ref, o_ref, *, gamma, n_valid, block_rows,
                       n_steps, needs_mask):
    p = pl.program_id(0)   # parallel slot (TensorCore share)
    s = pl.program_id(1)   # sequential block within the slot

    # Upcast inside the kernel (inputs may arrive as bf16/f32).
    x = x_ref[...].astype(jnp.float32)
    t = t_ref[...].astype(jnp.float32)

    # Numerically stable BCE-with-logits (same formula PyTorch uses):
    #   bce = max(x, 0) - x*t + log1p(exp(-|x|))
    e = jnp.exp(-jnp.abs(x))            # EUP #1
    lp = jnp.log1p(e)                   # EUP #2
    relu_x = jnp.maximum(x, 0.0)
    xt = x * t
    bce = relu_x - xt + lp

    # pt = exp(-bce), reusing lp: no divide, still exactly 3 EUP ops/elem.
    pt = jnp.exp(xt - relu_x - lp)      # EUP #3

    one_m_pt = 1.0 - pt
    if float(gamma) == 2.0:
        mod = one_m_pt * one_m_pt       # explicit square: no pow
    else:
        mod = one_m_pt ** gamma

    focal = mod * bce                   # alpha folded into the wrapper

    if needs_mask:
        # Mask out lane-pad elements, the Pallas-padded tail of a partial last
        # block, and the fully-phantom step used when total_blocks is odd and
        # split across 2 parallel slots.  Uses the *unclamped* logical block
        # index so phantom steps contribute exactly 0.  VPU-only work, hidden
        # under the binding EUP slot.
        logical_block = p * n_steps + s
        base = logical_block * (block_rows * LANES)
        row_i = lax.broadcasted_iota(jnp.int32, focal.shape, 0)
        lane_i = lax.broadcasted_iota(jnp.int32, focal.shape, 1)
        gidx = base + row_i * LANES + lane_i
        focal = jnp.where(gidx < n_valid, focal, 0.0)

    # Fold (block_rows, 128) -> (8, 128) with a balanced tree of vreg-aligned
    # static slices (layout-free; ~1 VPU add per vreg of data).
    n_sub = block_rows // SUBLANES
    parts = [focal[i * SUBLANES:(i + 1) * SUBLANES, :] for i in range(n_sub)]
    while len(parts) > 1:
        nxt = [parts[j] + parts[j + 1] for j in range(0, len(parts) - 1, 2)]
        if len(parts) % 2:
            nxt.append(parts[-1])
        parts = nxt
    fold = parts[0]

    # Accumulate directly into the resident (8, 128) output block.
    @pl.when(s == 0)
    def _():
        o_ref[...] = fold

    @pl.when(s > 0)
    def _():
        o_ref[...] += fold


def focal_loss(inputs, targets, alpha=ALPHA, gamma=GAMMA):
    assert inputs.shape == targets.shape
    n_valid = int(inputs.size)
    assert n_valid > 0

    x = inputs.reshape(-1)
    t = targets.reshape(-1)

    rows = pl.cdiv(n_valid, LANES)
    lane_pad = rows * LANES - n_valid
    if lane_pad:
        # TODO(synk): this sub-row pad (< 128 elems of padding) still copies
        # the full flat array through XLA; a tail-only second pass would avoid
        # the extra HBM round-trip for huge ragged inputs.  Pad value is
        # irrelevant — the kernel masks by n_valid.
        x = jnp.pad(x, (0, lane_pad))
        t = jnp.pad(t, (0, lane_pad))

    x2 = x.reshape(rows, LANES)
    t2 = t.reshape(rows, LANES)

    block_rows = min(MAX_BLOCK_ROWS, _round_up(rows, SUBLANES))
    total_blocks = pl.cdiv(rows, block_rows)

    # Split blocks across 2 TensorCores (v7x) when there is more than one.
    # TODO(synk): verify in a v7x profile that "parallel" actually shards
    # across both cores; if not, switch this axis to pltpu.CORE_PARALLEL.
    n_parallel = 2 if total_blocks >= 2 else 1
    n_steps = pl.cdiv(total_blocks, n_parallel)
    last_block = total_blocks - 1

    # Masking is only emitted when some covered element is not real data
    # (lane pad, partial last block, or a phantom step from the ceil split).
    needs_mask = (n_parallel * n_steps * block_rows * LANES) != n_valid

    def in_map(p, s):
        # Clamp the phantom step (odd block count split over 2 slots) onto the
        # last real block so its DMA stays in bounds; the kernel masks it to 0.
        return (jnp.minimum(p * n_steps + s, last_block), 0)

    kernel = functools.partial(
        _focal_loss_kernel,
        gamma=float(gamma),
        n_valid=n_valid,
        block_rows=block_rows,
        n_steps=n_steps,
        needs_mask=needs_mask,
    )

    in_spec = pl.BlockSpec((block_rows, LANES), in_map)
    out_spec = pl.BlockSpec((SUBLANES, LANES), lambda p, s: (p, 0))

    partial_sums = pl.pallas_call(
        kernel,
        out_shape=jax.ShapeDtypeStruct((n_parallel * SUBLANES, LANES),
                                       jnp.float32),
        grid_spec=pltpu.PrefetchScalarGridSpec(
            num_scalar_prefetch=0,
            grid=(n_parallel, n_steps),
            in_specs=[in_spec, in_spec],
            out_specs=out_spec,
        ),
        compiler_params=pltpu.CompilerParams(
            dimension_semantics=("parallel", "arbitrary"),
            vmem_limit_bytes=32 * 1024 * 1024,
        ),
    )(x2, t2)

    # Tiny wrapper-side reduce; alpha and the mean are folded in here.
    return jnp.sum(partial_sums) * (float(alpha) / n_valid)


def _reference_focal_loss(inputs, targets, alpha=ALPHA, gamma=GAMMA):
    x = inputs.astype(jnp.float32)
    t = targets.astype(jnp.float32)
    bce = jnp.maximum(x, 0.0) - x * t + jnp.log1p(jnp.exp(-jnp.abs(x)))
    pt = jnp.exp(-bce)
    return jnp.mean(alpha * (1.0 - pt) ** gamma * bce)


if __name__ == "__main__":
    key = jax.random.PRNGKey(0)
    k1, k2, k3, k4, k5, k6, k7, k8 = jax.random.split(key, 8)

    # Primary check: NCHW logits and {0,1} targets at the module's small shape.
    x = jax.random.normal(k1, (2, 4, 16, 16), dtype=jnp.float32)
    t = (jax.random.uniform(k2, (2, 4, 16, 16)) > 0.5).astype(jnp.float32)
    out = jax.block_until_ready(focal_loss(x, t))
    ref = _reference_focal_loss(x, t)
    assert jnp.allclose(out, ref, atol=1e-5, rtol=1e-5), (out, ref)

    # Ragged element count (exercises lane pad + in-kernel mask).
    xr = jax.random.normal(k3, (2, 3, 17, 19), dtype=jnp.float32)
    tr = (jax.random.uniform(k4, (2, 3, 17, 19)) > 0.5).astype(jnp.float32)
    outr = jax.block_until_ready(focal_loss(xr, tr))
    assert jnp.allclose(outr, _reference_focal_loss(xr, tr),
                        atol=1e-5, rtol=1e-5)

    # Odd multi-block size (exercises grid accumulation, the parallel split,
    # and the clamped + fully-masked phantom step).
    xb = jax.random.normal(k5, (12, 4, 128, 128), dtype=jnp.float32)
    tb = (jax.random.uniform(k6, (12, 4, 128, 128)) > 0.5).astype(jnp.float32)
    outb = jax.block_until_ready(focal_loss(xb, tb))
    assert jnp.allclose(outb, _reference_focal_loss(xb, tb),
                        atol=1e-5, rtol=1e-5)

    # bf16 inputs (halves HBM traffic on v5e; kernel upcasts internally).
    xh = jax.random.normal(k7, (4, 4, 128, 128), dtype=jnp.bfloat16)
    th = (jax.random.uniform(k8, (4, 4, 128, 128)) > 0.5).astype(jnp.bfloat16)
    outh = jax.block_until_ready(focal_loss(xh, th))
    assert jnp.allclose(outh, _reference_focal_loss(xh, th),
                        atol=1e-5, rtol=1e-5)

    print("KERNEL_OK")
</pallas_src>

<mosaic_0001>
module attributes {stable_mosaic.version = 11 : i64} {
  func.func @_focal_loss_kernel(%arg0: i32, %arg1: i32, %arg2: memref<16x128xf32, #tpu.memory_space<vmem>>, %arg3: memref<16x128xf32, #tpu.memory_space<vmem>>, %arg4: memref<8x128xf32, #tpu.memory_space<vmem>>) attributes {dimension_semantics = [#tpu.dimension_semantics<parallel>, #tpu.dimension_semantics<arbitrary>], iteration_bounds = array<i64: 1, 1>, scalar_prefetch = 0 : i64, scratch_operands = 0 : i64, tpu.core_type = #tpu.core_type<tc>, window_params = [{transform_indices = @transform_0, window_bounds = array<i64: 16, 128>}, {transform_indices = @transform_1, window_bounds = array<i64: 16, 128>}, {transform_indices = @transform_2, window_bounds = array<i64: 8, 128>}]} {
    %c0 = arith.constant 0 : index
    %c0_0 = arith.constant 0 : index
    %0 = vector.load %arg2[%c0, %c0_0] : memref<16x128xf32, #tpu.memory_space<vmem>>, vector<16x128xf32>
    %c0_1 = arith.constant 0 : index
    %c0_2 = arith.constant 0 : index
    %1 = vector.load %arg3[%c0_1, %c0_2] : memref<16x128xf32, #tpu.memory_space<vmem>>, vector<16x128xf32>
    %2 = math.absf %0 : vector<16x128xf32>
    %cst = arith.constant 0.000000e+00 : f32
    %3 = vector.broadcast %cst : f32 to vector<16x128xf32>
    %4 = arith.subf %3, %2 : vector<16x128xf32>
    %5 = math.exp %4 : vector<16x128xf32>
    %6 = math.log1p %5 : vector<16x128xf32>
    %cst_3 = arith.constant 0.000000e+00 : f32
    %7 = vector.broadcast %cst_3 : f32 to vector<16x128xf32>
    %8 = arith.maximumf %0, %7 : vector<16x128xf32>
    %9 = arith.mulf %0, %1 : vector<16x128xf32>
    %10 = arith.subf %8, %9 : vector<16x128xf32>
    %11 = arith.addf %10, %6 : vector<16x128xf32>
    %12 = arith.subf %9, %8 : vector<16x128xf32>
    %13 = arith.subf %12, %6 : vector<16x128xf32>
    %14 = math.exp %13 : vector<16x128xf32>
    %cst_4 = arith.constant 1.000000e+00 : f32
    %15 = vector.broadcast %cst_4 : f32 to vector<16x128xf32>
    %16 = arith.subf %15, %14 : vector<16x128xf32>
    %17 = arith.mulf %16, %16 : vector<16x128xf32>
    %18 = arith.mulf %17, %11 : vector<16x128xf32>
    %19 = vector.extract_strided_slice %18 {offsets = [0, 0], sizes = [8, 128], strides = [1, 1]} : vector<16x128xf32> to vector<8x128xf32>
    %20 = vector.extract_strided_slice %18 {offsets = [8, 0], sizes = [8, 128], strides = [1, 1]} : vector<16x128xf32> to vector<8x128xf32>
    %21 = arith.addf %19, %20 : vector<8x128xf32>
    %c0_i32 = arith.constant 0 : i32
    %22 = arith.cmpi eq, %arg1, %c0_i32 : i32
    %23 = arith.extui %22 : i1 to i32
    %c0_i32_5 = arith.constant 0 : i32
    %24 = arith.cmpi ne, %23, %c0_i32_5 : i32
    scf.if %24 {
      %c0_8 = arith.constant 0 : index
      %c0_9 = arith.constant 0 : index
      %28 = vector.load %arg4[%c0_8, %c0_9] : memref<8x128xf32, #tpu.memory_space<vmem>>, vector<8x128xf32>
      tpu.vector_store %arg4[%c0_8, %c0_9], %21 {strides = array<i32>} : memref<8x128xf32, #tpu.memory_space<vmem>>, vector<8x128xf32>,
    } else {
    }
    %c0_i32_6 = arith.constant 0 : i32
    %25 = arith.cmpi sgt, %arg1, %c0_i32_6 : i32
    %26 = arith.extui %25 : i1 to i32
    %c0_i32_7 = arith.constant 0 : i32
    %27 = arith.cmpi ne, %26, %c0_i32_7 : i32
    scf.if %27 {
      %c0_8 = arith.constant 0 : index
      %c0_9 = arith.constant 0 : index
      %28 = vector.load %arg4[%c0_8, %c0_9] : memref<8x128xf32, #tpu.memory_space<vmem>>, vector<8x128xf32>
      %29 = arith.addf %28, %21 : vector<8x128xf32>
      %c0_10 = arith.constant 0 : index
      %c0_11 = arith.constant 0 : index
      %30 = vector.load %arg4[%c0_10, %c0_11] : memref<8x128xf32, #tpu.memory_space<vmem>>, vector<8x128xf32>
      tpu.vector_store %arg4[%c0_10, %c0_11], %29 {strides = array<i32>} : memref<8x128xf32, #tpu.memory_space<vmem>>, vector<8x128xf32>,
    } else {
    }
    return
  }
  func.func @transform_0(%arg0: i32, %arg1: i32) -> (i32, i32) {
    %c1_i32 = arith.constant 1 : i32
    %0 = arith.muli %arg0, %c1_i32 : i32
    %1 = arith.addi %0, %arg1 : i32
    %c0_i32 = arith.constant 0 : i32
    %2 = arith.minsi %1, %c0_i32 : i32
    %c0_i32_0 = arith.constant 0 : i32
    %c0_i32_1 = arith.constant 0 : i32
    return %2, %c0_i32_0 : i32, i32
  }
  func.func @transform_1(%arg0: i32, %arg1: i32) -> (i32, i32) {
    %c1_i32 = arith.constant 1 : i32
    %0 = arith.muli %arg0, %c1_i32 : i32
    %1 = arith.addi %0, %arg1 : i32
    %c0_i32 = arith.constant 0 : i32
    %2 = arith.minsi %1, %c0_i32 : i32
    %c0_i32_0 = arith.constant 0 : i32
    %c0_i32_1 = arith.constant 0 : i32
    return %2, %c0_i32_0 : i32, i32
  }
  func.func @transform_2(%arg0: i32, %arg1: i32) -> (i32, i32) {
    %c0_i32 = arith.constant 0 : i32
    %c0_i32_0 = arith.constant 0 : i32
    return %arg0, %c0_i32 : i32, i32
  }
}

</mosaic_0001>

<llo_original>
// kernel: tpu_custom_call.1
$region0: #{tpu_custom_call.1}
  #allocation0 [shape = 'u32[]', space=smem, size = 0x4, offset = 0x4, fixed_abs, tag = 'smem constant byte address 0x4 - core index']
  #allocation1 [shape = 'u32[72,128]{1,0:T(1,128)}', space=vmem, size = 0x9000, scoped, tag = 'internal scratch']
  %s0 = inlined_call_operand.hbm [shape: f32[16,128], index: 0, kind: input, shape index: {}]
  %s1 = inlined_call_operand.hbm [shape: f32[16,128], index: 1, kind: input, shape index: {}]
  %s2 = inlined_call_operand.hbm [shape: f32[8,128], index: 2, kind: output, shape index: {}]
  %s3 = sld [smem:[#allocation0]]
  $region34: #{tpu_custom_call.1} parent=0
    _
  %s5 = ssub.s32 1, %s3
  %s6 = scalar_select 0, %s5, %s3
  $region1: #{tpu_custom_call.1} parent=0
    #allocation2 [shape = 'u8[8192]{0}', space=vmem, size = 0x2000, scoped, tag = 'input window, operand 0, single buffered']
    #allocation3 [shape = 's32[1]{0}', space=sflag, size = 0x4, scoped, tag = 'scoped memory for tpu_custom_call.1']
    #allocation4 [shape = 's32[1]{0}', space=sflag, size = 0x4, scoped, tag = 'scoped memory for tpu_custom_call.1']
    #allocation5 [shape = 'u8[8192]{0}', space=vmem, size = 0x2000, scoped, tag = 'input window, operand 1, single buffered']
    #allocation6 [shape = 's32[1]{0}', space=sflag, size = 0x4, scoped, tag = 'scoped memory for tpu_custom_call.1']
    #allocation7 [shape = 'u8[4096]{0}', space=vmem, size = 0x1000, scoped, tag = 'output window, operand 0, single buffered']
    %7 = vsyncpa [#allocation3], 0
    %8 = vsyncpa [#allocation6], 0
    %9 = vsyncpa [#allocation4], 0
    // Predicated region
    $region2: #{tpu_custom_call.1} parent=1 // pred_check
      _
    $region3: #{tpu_custom_call.1} parent=1 // pred_check_branch
      %11 = sbr.rel (0) target = $region5
    $region4: #{tpu_custom_call.1} parent=1 // pred_region
      %s12 = sadd.s32 0, 0
      %p13 = scmp.lt.s32.totalorder %s12, 0
      %s14 = scalar_select %p13, %s12, 0
      %s15 = smul.u32 2, %s14
      %17 = vsyncadd [#allocation3], 0
      %s18 = smul.addr %s15, 8
      %s19 = scalar_lea.hbm %s0, %s18
      %s20 = sshll.u32 %s19, 4
      %s21 = int_to_ptr.hbm [resolvable:$true] %s20
      %s22 = sshll.u32 [#allocation2], 4
      %s23 = int_to_ptr.vmem [resolvable:$true] %s22
      %28 = dma.hbm_to_vmem [thread:$0]  %s21, 256, %s23, [#allocation3], 128, 128, 8
    $region5: #{tpu_custom_call.1} parent=1 // pred_fallthru
      _
    // Predicated region
    $region6: #{tpu_custom_call.1} parent=1 // pred_check
      _
    $region7: #{tpu_custom_call.1} parent=1 // pred_check_branch
      %30 = sbr.rel (0) target = $region9
    $region8: #{tpu_custom_call.1} parent=1 // pred_region
      %s31 = sadd.s32 0, 0
      %p32 = scmp.lt.s32.totalorder %s31, 0
      %s33 = scalar_select %p32, %s31, 0
      %s34 = smul.u32 2, %s33
      %36 = vsyncadd [#allocation6], 0
      %s37 = smul.addr %s34, 8
      %s38 = scalar_lea.hbm %s1, %s37
      %s39 = sshll.u32 %s38, 4
      %s40 = int_to_ptr.hbm [resolvable:$true] %s39
      %s41 = sshll.u32 [#allocation5], 4
      %s42 = int_to_ptr.vmem [resolvable:$true] %s41
      %47 = dma.hbm_to_vmem [thread:$0]  %s40, 256, %s42, [#allocation6], 128, 128, 8
    $region9: #{tpu_custom_call.1} parent=1 // pred_fallthru
      _
    // Predicated region
    $region10: #{tpu_custom_call.1} parent=1 // pred_check
      _
    $region11: #{tpu_custom_call.1} parent=1 // pred_check_branch
      %49 = sbr.rel (0) target = $region13
    $region12: #{tpu_custom_call.1} parent=1 // pred_region
      %51 = dma.done [#allocation3], 256
    $region13: #{tpu_custom_call.1} parent=1 // pred_fallthru
      _
    // Predicated region
    $region14: #{tpu_custom_call.1} parent=1 // pred_check
      _
    $region15: #{tpu_custom_call.1} parent=1 // pred_check_branch
      %53 = sbr.rel (0) target = $region17
    $region16: #{tpu_custom_call.1} parent=1 // pred_region
      %55 = dma.done [#allocation6], 256
    $region17: #{tpu_custom_call.1} parent=1 // pred_fallthru
      _
    %s56 = sadd.s32 0, 0
    %p57 = scmp.lt.s32.totalorder %s56, 0
    %s58 = scalar_select %p57, %s56, 0
    %s59 = smul.u32 2, %s58
    %s60 = sadd.s32 0, 0
    %p61 = scmp.lt.s32.totalorder %s60, 0
    %s62 = scalar_select %p61, %s60, 0
    %s63 = smul.u32 2, %s62
    %v64 = vld [vmem:[#allocation2] sm:$0xff]
    %v65 = vld [vmem:[#allocation2 + $0x8] sm:$0xff]
    %v66 = vld [vmem:[#allocation5] sm:$0xff]
    %v67 = vld [vmem:[#allocation5 + $0x8] sm:$0xff]
    %v68 = vand.u32 2147483647, %v64
    %v69 = vand.u32 2147483647, %v65
    %v70 = vsub.f32 0.0, %v68
    %v71 = vsub.f32 0.0, %v69
    %v72 = vmul.f32 %v70, 1.442695
    %v73 = vpow.pop %v72
    %v74 = vmul.f32 %v71, 1.442695
    %v75 = vpow.pop %v74
    %v76 = vadd.f32 %v73, 1.0
    %v77 = vlog2.pop %v76
    %v78 = vmul.f32 %v77, 0.6931472
    %v79 = vmul.f32 -0.5, %v73
    %v80 = vadd.f32 %v79, 1.0
    %v81 = vmul.f32 %v80, %v73
    %v82 = vand.u32 2147483647, %v73
    %vm83 = vcmp.lt.f32.partialorder %v82, 0.0004427343
    %v84 = vsel %vm83, %v81, %v78
    %v85 = vadd.f32 %v75, 1.0
    %v86 = vlog2.pop %v85
    %v87 = vmul.f32 %v86, 0.6931472
    %v88 = vmul.f32 -0.5, %v75
    %v89 = vadd.f32 %v88, 1.0
    %v90 = vmul.f32 %v89, %v75
    %v91 = vand.u32 2147483647, %v75
    %vm92 = vcmp.lt.f32.partialorder %v91, 0.0004427343
    %v93 = vsel %vm92, %v90, %v87
    %v94 = vmax.f32 %v64, 0.0
    %v95 = vmax.f32 %v65, 0.0
    %v96 = vmul.f32 %v64, %v66
    %v97 = vmul.f32 %v65, %v67
    %v98 = vsub.f32 %v94, %v96
    %v99 = vsub.f32 %v95, %v97
    %v100 = vadd.f32 %v98, %v84
    %v101 = vadd.f32 %v99, %v93
    %v102 = vsub.f32 %v96, %v94
    %v103 = vsub.f32 %v97, %v95
    %v104 = vsub.f32 %v102, %v84
    %v105 = vsub.f32 %v103, %v93
    %v106 = vmul.f32 %v104, 1.442695
    %v107 = vpow.pop %v106
    %v108 = vmul.f32 %v105, 1.442695
    %v109 = vpow.pop %v108
    %v110 = vsub.f32 1.0, %v107
    %v111 = vsub.f32 1.0, %v109
    %v112 = vmul.f32 %v110, %v110
    %v113 = vmul.f32 %v111, %v111
    %v114 = vmul.f32 %v112, %v100
    %v115 = vmul.f32 %v113, %v101
    %v116 = vadd.f32 %v114, %v115
    %p117 = scmp.eq.s32.totalorder 0, 0
    // Predicated region
    $region18: #{tpu_custom_call.1} parent=1 // pred_check
      %p118 = pneg %p117
    $region19: #{tpu_custom_call.1} parent=1 // pred_check_branch
      %120 = sbr.rel (%p118) target = $region21
    $region20: #{tpu_custom_call.1} parent=1 // pred_region
      %121 = vst [vmem:[#allocation7] sm:$0xff] %v116
    $region21: #{tpu_custom_call.1} parent=1 // pred_fallthru
      _
    %p122 = scmp.gt.s32.totalorder 0, 0
    // Predicated region
    $region22: #{tpu_custom_call.1} parent=1 // pred_check
      %p123 = pneg %p122
    $region23: #{tpu_custom_call.1} parent=1 // pred_check_branch
      %125 = sbr.rel (%p123) target = $region25
    $region24: #{tpu_custom_call.1} parent=1 // pred_region
      %v126 = vld [vmem:[#allocation7] sm:$0xff]
      %v127 = vadd.f32 %v126, %v116
      %128 = vst [vmem:[#allocation7] sm:$0xff] %v127
    $region25: #{tpu_custom_call.1} parent=1 // pred_fallthru
      _
    // Predicated region
    $region26: #{tpu_custom_call.1} parent=1 // pred_check
      _
    $region27: #{tpu_custom_call.1} parent=1 // pred_check_branch
      %130 = sbr.rel (0) target = $region29
    $region28: #{tpu_custom_call.1} parent=1 // pred_region
      %132 = vsyncadd [#allocation4], 0
      %s134 = sshll.u32 [#allocation7], 4
      %s135 = int_to_ptr.vmem [resolvable:$true] %s134
      %s136 = sshll.u32 %s2, 4
      %s137 = int_to_ptr.hbm [resolvable:$true] %s136
      %139 = dma.vmem_to_hbm [thread:$0]  %s135, 128, %s137, [#allocation4]
    $region29: #{tpu_custom_call.1} parent=1 // pred_fallthru
      _
    // Predicated region
    $region30: #{tpu_custom_call.1} parent=1 // pred_check
      _
    $region31: #{tpu_custom_call.1} parent=1 // pred_check_branch
      %141 = sbr.rel (0) target = $region33
    $region32: #{tpu_custom_call.1} parent=1 // pred_region
      %143 = dma.done [#allocation4], 128
    $region33: #{tpu_custom_call.1} parent=1 // pred_fallthru
      _
    %144 = vsyncpa [#allocation3], 1
    %145 = vsyncpa [#allocation6], 1
    %146 = vsyncpa [#allocation4], 1

</llo_original>
